<compile_context>
chip_gen: v7x
topology: tpu7x:2x2x1
jax: 0.10.0
libtpu: 0.0.40
codegen_flags: <defaults>
</compile_context>

<pallas_src>
import jax
import jax.numpy as jnp
from jax.experimental import pallas as pl
from jax.experimental.pallas import tpu as pltpu

_LANE = 128
_SUBLANE = 8


# ----------------------------- Pallas kernel --------------------------------

def _fcnn_kernel(idx_ref, emb_ref, w1_ref, b1_ref, w2_ref, b2_ref,
                 w3_ref, b3_ref, o_ref):
    """Fused: embedding gather (one-hot @ table) + 3-layer MLP with ReLUs."""
    tb = idx_ref.shape[0]
    n_prot = emb_ref.shape[0]

    # One-hot gather on the MXU: exact for 1.0/0.0 one-hot rows.
    idx = idx_ref[...]                                        # (TB, 1) int32
    iota = jax.lax.broadcasted_iota(jnp.int32, (tb, n_prot), 1)
    onehot = (idx == iota).astype(emb_ref.dtype)              # (TB, P)
    x = jnp.dot(onehot, emb_ref[...],
                preferred_element_type=jnp.float32)           # (TB, E) f32

    # Layer 1 + ReLU
    h = jnp.dot(x.astype(w1_ref.dtype), w1_ref[...],
                preferred_element_type=jnp.float32) + b1_ref[...]
    h = jnp.maximum(h, 0.0)
    # TODO(synk): dropout is identity in eval mode; training-mode dropout not implemented.

    # Layer 2 + ReLU
    h = jnp.dot(h.astype(w2_ref.dtype), w2_ref[...],
                preferred_element_type=jnp.float32) + b2_ref[...]
    h = jnp.maximum(h, 0.0)

    # Output layer (lane-padded to 128 for dense stores)
    o = jnp.dot(h.astype(w3_ref.dtype), w3_ref[...],
                preferred_element_type=jnp.float32) + b3_ref[...]
    o_ref[...] = o.astype(o_ref.dtype)


# ------------------------------- wrapper -------------------------------------

def _round_up(n, m):
    return ((n + m - 1) // m) * m


def protein_index_fcnn_forward(indices, emb_table, params, *,
                               batch_tile=512, param_dtype=jnp.float32):
    """Full forward: fused embedding gather + 3-layer MLP in one pallas_call.

    Args:
      indices:    (B,) int32 protein indices.
      emb_table:  (num_proteins, E) float32 embedding table.
      params:     dict with w1 (E,H1), b1 (1,H1), w2 (H1,H2), b2 (1,H2),
                  w3 (H2,OUT), b3 (1,OUT).
      batch_tile: max rows per grid step (will be shrunk/aligned as needed).
      param_dtype: storage dtype for emb table + weights (bf16 on v6e/v7x
                  halves HBM bytes; accumulation stays f32 either way).
    Returns:
      (B, OUT) float32 latent protein features.
    """
    B = int(indices.shape[0])
    n_prot, E = emb_table.shape
    H1 = params["w1"].shape[1]
    H2 = params["w2"].shape[1]
    OUT = params["w3"].shape[1]

    # ---- lane-dense output: pad the last layer to a multiple of 128 lanes ----
    OUT_P = _round_up(max(OUT, _LANE), _LANE)
    w3 = params["w3"]
    b3 = params["b3"]
    if OUT_P != OUT:
        w3 = jnp.pad(w3, ((0, 0), (0, OUT_P - OUT)))
        b3 = jnp.pad(b3, ((0, 0), (0, OUT_P - OUT)))

    # ---- dtypes: weights/table in param_dtype, biases + accum in f32 ----
    emb = emb_table.astype(param_dtype)
    w1 = params["w1"].astype(param_dtype)
    w2 = params["w2"].astype(param_dtype)
    w3 = w3.astype(param_dtype)
    b1 = params["b1"].astype(jnp.float32)
    b2 = params["b2"].astype(jnp.float32)
    b3 = b3.astype(jnp.float32)

    # ---- batch padding + tiling (arbitrary B supported) ----
    tile = max(_SUBLANE, min(_round_up(batch_tile, _SUBLANE), _round_up(B, _SUBLANE)))
    Bp = _round_up(B, tile)
    idx = indices.astype(jnp.int32).reshape(-1, 1)            # (B, 1)
    if Bp != B:
        # Padding rows gather protein 0 (in-bounds); results are sliced off.
        idx = jnp.pad(idx, ((0, Bp - B), (0, 0)))

    grid = (Bp // tile,)

    out_padded = pl.pallas_call(
        _fcnn_kernel,
        out_shape=jax.ShapeDtypeStruct((Bp, OUT_P), jnp.float32),
        grid_spec=pltpu.PrefetchScalarGridSpec(
            num_scalar_prefetch=0,
            grid=grid,
            in_specs=[
                # per-tile protein indices
                pl.BlockSpec((tile, 1), lambda i: (i, 0)),
                # embedding table: whole array, VMEM-resident across the grid
                pl.BlockSpec((n_prot, E), lambda i: (0, 0)),
                # MLP weights / biases: whole arrays, constant block index
                pl.BlockSpec((E, H1),   lambda i: (0, 0)),
                pl.BlockSpec((1, H1),   lambda i: (0, 0)),
                pl.BlockSpec((H1, H2),  lambda i: (0, 0)),
                pl.BlockSpec((1, H2),   lambda i: (0, 0)),
                pl.BlockSpec((H2, OUT_P), lambda i: (0, 0)),
                pl.BlockSpec((1, OUT_P),  lambda i: (0, 0)),
            ],
            out_specs=pl.BlockSpec((tile, OUT_P), lambda i: (i, 0)),
        ),
        compiler_params=pltpu.CompilerParams(
            dimension_semantics=("parallel",),
        ),
    )(idx, emb, w1, b1, w2, b2, w3, b3)

    return out_padded[:B, :OUT]


# ------------------------- deterministic init / test ------------------------

def init_params(key, num_proteins, embedding_dim, hidden_params, output_dim):
    """Deterministic parameter init (synthetic — no checkpoint load)."""
    dims = [embedding_dim] + list(hidden_params) + [output_dim]
    keys = jax.random.split(key, 1 + 2 * (len(dims) - 1))
    emb_table = jax.random.normal(keys[0], (num_proteins, embedding_dim),
                                  dtype=jnp.float32)
    params = {}
    for li in range(len(dims) - 1):
        fan_in, fan_out = dims[li], dims[li + 1]
        wk, bk = keys[1 + 2 * li], keys[2 + 2 * li]
        scale = 1.0 / jnp.sqrt(jnp.float32(fan_in))
        params[f"w{li + 1}"] = (jax.random.uniform(
            wk, (fan_in, fan_out), jnp.float32, -1.0, 1.0) * scale)
        params[f"b{li + 1}"] = (jax.random.uniform(
            bk, (1, fan_out), jnp.float32, -1.0, 1.0) * scale)
    return emb_table, params


def reference_forward(indices, emb_table, params):
    """Pure-JAX reference for correctness checking."""
    x = jnp.take(emb_table, indices, axis=0)
    h = jnp.maximum(x @ params["w1"] + params["b1"], 0.0)
    h = jnp.maximum(h @ params["w2"] + params["b2"], 0.0)
    return h @ params["w3"] + params["b3"]


if __name__ == "__main__":
    # Small shapes consistent with the module's config:
    #   num_proteins=16, embedding_dim=32, hidden_params=[64, 64], output_dim=32
    NUM_PROTEINS = 16
    EMBEDDING_DIM = 32
    HIDDEN_PARAMS = [64, 64]
    OUTPUT_DIM = 32
    BATCH = 16

    key = jax.random.PRNGKey(0)
    k_idx, k_param, k_idx2 = jax.random.split(key, 3)

    emb_table, params = init_params(
        k_param, NUM_PROTEINS, EMBEDDING_DIM, HIDDEN_PARAMS, OUTPUT_DIM)

    # data.protein_features: a batch of integer protein indices.
    protein_indices = jax.random.randint(
        k_idx, (BATCH,), 0, NUM_PROTEINS, dtype=jnp.int32)

    # Fused kernel: for BATCH=16 this collapses to a single grid step.
    out = protein_index_fcnn_forward(protein_indices, emb_table, params)
    out = jax.block_until_ready(out)

    ref = reference_forward(protein_indices, emb_table, params)
    assert out.shape == (BATCH, OUTPUT_DIM)
    assert jnp.allclose(out, ref, atol=1e-5, rtol=1e-5), "mismatch vs reference"

    # Also exercise the non-divisible-batch (padding) path.
    odd_indices = jax.random.randint(
        k_idx2, (13,), 0, NUM_PROTEINS, dtype=jnp.int32)
    out_odd = jax.block_until_ready(
        protein_index_fcnn_forward(odd_indices, emb_table, params))
    ref_odd = reference_forward(odd_indices, emb_table, params)
    assert out_odd.shape == (13, OUTPUT_DIM)
    assert jnp.allclose(out_odd, ref_odd, atol=1e-5, rtol=1e-5), "mismatch (odd batch)"

    print("KERNEL_OK")
</pallas_src>

<mosaic_0001>
module attributes {stable_mosaic.version = 11 : i64} {
  func.func @_fcnn_kernel(%arg0: i32, %arg1: memref<16x1xi32, #tpu.memory_space<vmem>>, %arg2: memref<16x32xf32, #tpu.memory_space<vmem>>, %arg3: memref<32x64xf32, #tpu.memory_space<vmem>>, %arg4: memref<1x64xf32, #tpu.memory_space<vmem>>, %arg5: memref<64x64xf32, #tpu.memory_space<vmem>>, %arg6: memref<1x64xf32, #tpu.memory_space<vmem>>, %arg7: memref<64x128xf32, #tpu.memory_space<vmem>>, %arg8: memref<1x128xf32, #tpu.memory_space<vmem>>, %arg9: memref<16x128xf32, #tpu.memory_space<vmem>>) attributes {dimension_semantics = [#tpu.dimension_semantics<parallel>], iteration_bounds = array<i64: 1>, scalar_prefetch = 0 : i64, scratch_operands = 0 : i64, tpu.core_type = #tpu.core_type<tc>, window_params = [{transform_indices = @transform_0, window_bounds = array<i64: 16, 1>}, {pipeline_mode = #tpu.pipeline_mode<synchronous>, transform_indices = @transform_1, window_bounds = array<i64: 16, 32>}, {pipeline_mode = #tpu.pipeline_mode<synchronous>, transform_indices = @transform_2, window_bounds = array<i64: 32, 64>}, {pipeline_mode = #tpu.pipeline_mode<synchronous>, transform_indices = @transform_3, window_bounds = array<i64: 1, 64>}, {pipeline_mode = #tpu.pipeline_mode<synchronous>, transform_indices = @transform_4, window_bounds = array<i64: 64, 64>}, {pipeline_mode = #tpu.pipeline_mode<synchronous>, transform_indices = @transform_5, window_bounds = array<i64: 1, 64>}, {pipeline_mode = #tpu.pipeline_mode<synchronous>, transform_indices = @transform_6, window_bounds = array<i64: 64, 128>}, {pipeline_mode = #tpu.pipeline_mode<synchronous>, transform_indices = @transform_7, window_bounds = array<i64: 1, 128>}, {transform_indices = @transform_8, window_bounds = array<i64: 16, 128>}]} {
    %c0 = arith.constant 0 : index
    %c0_0 = arith.constant 0 : index
    %0 = vector.load %arg1[%c0, %c0_0] : memref<16x1xi32, #tpu.memory_space<vmem>>, vector<16x1xi32>
    %1 = tpu.iota {dimensions = array<i32: 1>} : vector<16x16xi32>
    %2 = vector.broadcast %0 : vector<16x1xi32> to vector<16x16xi32>
    %3 = arith.cmpi eq, %2, %1 : vector<16x16xi32>
    %4 = arith.extui %3 : vector<16x16xi1> to vector<16x16xi32>
    %5 = arith.sitofp %4 : vector<16x16xi32> to vector<16x16xf32>
    %c0_1 = arith.constant 0 : index
    %c0_2 = arith.constant 0 : index
    %6 = vector.load %arg2[%c0_1, %c0_2] : memref<16x32xf32, #tpu.memory_space<vmem>>, vector<16x32xf32>
    %cst = arith.constant dense<0.000000e+00> : vector<16x32xf32>
    %7 = tpu.matmul %5, %6, %cst {dimension_numbers = #tpu.dot_dimension_numbers<[1], [0], [0], [1], [0, 0, 1, 1], [], []>} : vector<16x16xf32>, vector<16x32xf32>, vector<16x32xf32> -> vector<16x32xf32>
    %c0_3 = arith.constant 0 : index
    %c0_4 = arith.constant 0 : index
    %8 = vector.load %arg3[%c0_3, %c0_4] : memref<32x64xf32, #tpu.memory_space<vmem>>, vector<32x64xf32>
    %cst_5 = arith.constant dense<0.000000e+00> : vector<16x64xf32>
    %9 = tpu.matmul %7, %8, %cst_5 {dimension_numbers = #tpu.dot_dimension_numbers<[1], [0], [0], [1], [0, 0, 1, 1], [], []>} : vector<16x32xf32>, vector<32x64xf32>, vector<16x64xf32> -> vector<16x64xf32>
    %c0_6 = arith.constant 0 : index
    %c0_7 = arith.constant 0 : index
    %10 = vector.load %arg4[%c0_6, %c0_7] : memref<1x64xf32, #tpu.memory_space<vmem>>, vector<1x64xf32>
    %11 = vector.broadcast %10 : vector<1x64xf32> to vector<16x64xf32>
    %12 = arith.addf %9, %11 : vector<16x64xf32>
    %cst_8 = arith.constant 0.000000e+00 : f32
    %13 = vector.broadcast %cst_8 : f32 to vector<16x64xf32>
    %14 = arith.maximumf %12, %13 : vector<16x64xf32>
    %c0_9 = arith.constant 0 : index
    %c0_10 = arith.constant 0 : index
    %15 = vector.load %arg5[%c0_9, %c0_10] : memref<64x64xf32, #tpu.memory_space<vmem>>, vector<64x64xf32>
    %cst_11 = arith.constant dense<0.000000e+00> : vector<16x64xf32>
    %16 = tpu.matmul %14, %15, %cst_11 {dimension_numbers = #tpu.dot_dimension_numbers<[1], [0], [0], [1], [0, 0, 1, 1], [], []>} : vector<16x64xf32>, vector<64x64xf32>, vector<16x64xf32> -> vector<16x64xf32>
    %c0_12 = arith.constant 0 : index
    %c0_13 = arith.constant 0 : index
    %17 = vector.load %arg6[%c0_12, %c0_13] : memref<1x64xf32, #tpu.memory_space<vmem>>, vector<1x64xf32>
    %18 = vector.broadcast %17 : vector<1x64xf32> to vector<16x64xf32>
    %19 = arith.addf %16, %18 : vector<16x64xf32>
    %cst_14 = arith.constant 0.000000e+00 : f32
    %20 = vector.broadcast %cst_14 : f32 to vector<16x64xf32>
    %21 = arith.maximumf %19, %20 : vector<16x64xf32>
    %c0_15 = arith.constant 0 : index
    %c0_16 = arith.constant 0 : index
    %22 = vector.load %arg7[%c0_15, %c0_16] : memref<64x128xf32, #tpu.memory_space<vmem>>, vector<64x128xf32>
    %cst_17 = arith.constant dense<0.000000e+00> : vector<16x128xf32>
    %23 = tpu.matmul %21, %22, %cst_17 {dimension_numbers = #tpu.dot_dimension_numbers<[1], [0], [0], [1], [0, 0, 1, 1], [], []>} : vector<16x64xf32>, vector<64x128xf32>, vector<16x128xf32> -> vector<16x128xf32>
    %c0_18 = arith.constant 0 : index
    %c0_19 = arith.constant 0 : index
    %24 = vector.load %arg8[%c0_18, %c0_19] : memref<1x128xf32, #tpu.memory_space<vmem>>, vector<1x128xf32>
    %25 = vector.broadcast %24 : vector<1x128xf32> to vector<16x128xf32>
    %26 = arith.addf %23, %25 : vector<16x128xf32>
    %c0_20 = arith.constant 0 : index
    %c0_21 = arith.constant 0 : index
    %27 = vector.load %arg9[%c0_20, %c0_21] : memref<16x128xf32, #tpu.memory_space<vmem>>, vector<16x128xf32>
    tpu.vector_store %arg9[%c0_20, %c0_21], %26 {strides = array<i32>} : memref<16x128xf32, #tpu.memory_space<vmem>>, vector<16x128xf32>,
    return
  }
  func.func @transform_0(%arg0: i32) -> (i32, i32) {
    %c0_i32 = arith.constant 0 : i32
    %c0_i32_0 = arith.constant 0 : i32
    return %arg0, %c0_i32 : i32, i32
  }
  func.func @transform_1(%arg0: i32) -> (i32, i32) {
    %c0_i32 = arith.constant 0 : i32
    %c0_i32_0 = arith.constant 0 : i32
    %c0_i32_1 = arith.constant 0 : i32
    return %c0_i32, %c0_i32_0 : i32, i32
  }
  func.func @transform_2(%arg0: i32) -> (i32, i32) {
    %c0_i32 = arith.constant 0 : i32
    %c0_i32_0 = arith.constant 0 : i32
    %c0_i32_1 = arith.constant 0 : i32
    return %c0_i32, %c0_i32_0 : i32, i32
  }
  func.func @transform_3(%arg0: i32) -> (i32, i32) {
    %c0_i32 = arith.constant 0 : i32
    %c0_i32_0 = arith.constant 0 : i32
    %c0_i32_1 = arith.constant 0 : i32
    return %c0_i32, %c0_i32_0 : i32, i32
  }
  func.func @transform_4(%arg0: i32) -> (i32, i32) {
    %c0_i32 = arith.constant 0 : i32
    %c0_i32_0 = arith.constant 0 : i32
    %c0_i32_1 = arith.constant 0 : i32
    return %c0_i32, %c0_i32_0 : i32, i32
  }
  func.func @transform_5(%arg0: i32) -> (i32, i32) {
    %c0_i32 = arith.constant 0 : i32
    %c0_i32_0 = arith.constant 0 : i32
    %c0_i32_1 = arith.constant 0 : i32
    return %c0_i32, %c0_i32_0 : i32, i32
  }
  func.func @transform_6(%arg0: i32) -> (i32, i32) {
    %c0_i32 = arith.constant 0 : i32
    %c0_i32_0 = arith.constant 0 : i32
    %c0_i32_1 = arith.constant 0 : i32
    return %c0_i32, %c0_i32_0 : i32, i32
  }
  func.func @transform_7(%arg0: i32) -> (i32, i32) {
    %c0_i32 = arith.constant 0 : i32
    %c0_i32_0 = arith.constant 0 : i32
    %c0_i32_1 = arith.constant 0 : i32
    return %c0_i32, %c0_i32_0 : i32, i32
  }
  func.func @transform_8(%arg0: i32) -> (i32, i32) {
    %c0_i32 = arith.constant 0 : i32
    %c0_i32_0 = arith.constant 0 : i32
    return %arg0, %c0_i32 : i32, i32
  }
}

</mosaic_0001>

<llo_original>
// kernel: tpu_custom_call.1
$region0: #{tpu_custom_call.1}
  #allocation0 [shape = 'u32[]', space=smem, size = 0x4, offset = 0x4, fixed_abs, tag = 'smem constant byte address 0x4 - core index']
  #allocation1 [shape = 'u32[144,128]{1,0:T(1,128)}', space=vmem, size = 0x12000, scoped, tag = 'internal scratch']
  %s0 = inlined_call_operand.vmem [shape: s32[16,1], index: 0, kind: input, shape index: {}]
  %s1 = inlined_call_operand.vmem [shape: f32[16,32], index: 1, kind: input, shape index: {}]
  %s2 = inlined_call_operand.hbm [shape: f32[32,64], index: 2, kind: input, shape index: {}]
  %s3 = inlined_call_operand.vmem [shape: f32[1,64], index: 3, kind: input, shape index: {}]
  %s4 = inlined_call_operand.hbm [shape: f32[64,64], index: 4, kind: input, shape index: {}]
  %s5 = inlined_call_operand.vmem [shape: f32[1,64], index: 5, kind: input, shape index: {}]
  %s6 = inlined_call_operand.hbm [shape: f32[64,128], index: 6, kind: input, shape index: {}]
  %s7 = inlined_call_operand.vmem [shape: f32[1,128], index: 7, kind: input, shape index: {}]
  %s8 = inlined_call_operand.hbm [shape: f32[16,128], index: 8, kind: output, shape index: {}]
  %s9 = sld [smem:[#allocation0]]
  $region54: #{tpu_custom_call.1} parent=0
    _
  %s11 = ssub.s32 1, %s9
  %s12 = scalar_select 0, %s11, %s9
  $region1: #{tpu_custom_call.1} parent=0
    #allocation2 [shape = 'u8[16384]{0}', space=vmem, size = 0x4000, scoped, tag = 'input window, operand 2, single buffered']
    #allocation3 [shape = 's32[1]{0}', space=sflag, size = 0x4, scoped, tag = 'scoped memory for tpu_custom_call.1']
    #allocation4 [shape = 's32[1]{0}', space=sflag, size = 0x4, scoped, tag = 'scoped memory for tpu_custom_call.1']
    #allocation5 [shape = 'u8[32768]{0}', space=vmem, size = 0x8000, scoped, tag = 'input window, operand 4, single buffered']
    #allocation6 [shape = 's32[1]{0}', space=sflag, size = 0x4, scoped, tag = 'scoped memory for tpu_custom_call.1']
    #allocation7 [shape = 'u8[32768]{0}', space=vmem, size = 0x8000, scoped, tag = 'input window, operand 6, single buffered']
    #allocation8 [shape = 'u8[8192]{0}', space=vmem, size = 0x2000, scoped, tag = 'output window, operand 0, single buffered']
    %13 = vsyncpa [#allocation3], 0
    %14 = vsyncpa [#allocation6], 0
    %15 = vsyncpa [#allocation4], 0
    // Predicated region
    $region2: #{tpu_custom_call.1} parent=1 // pred_check
      _
    $region3: #{tpu_custom_call.1} parent=1 // pred_check_branch
      %17 = sbr.rel (0) target = $region5
    $region4: #{tpu_custom_call.1} parent=1 // pred_region
      _
    $region5: #{tpu_custom_call.1} parent=1 // pred_fallthru
      _
    // Predicated region
    $region6: #{tpu_custom_call.1} parent=1 // pred_check
      _
    $region7: #{tpu_custom_call.1} parent=1 // pred_check_branch
      %19 = sbr.rel (0) target = $region9
    $region8: #{tpu_custom_call.1} parent=1 // pred_region
      _
    $region9: #{tpu_custom_call.1} parent=1 // pred_fallthru
      _
    // Predicated region
    $region10: #{tpu_custom_call.1} parent=1 // pred_check
      _
    $region11: #{tpu_custom_call.1} parent=1 // pred_check_branch
      %21 = sbr.rel (0) target = $region13
    $region12: #{tpu_custom_call.1} parent=1 // pred_region
      %s23 = ssub.s32 512, 512
      %24 = vsyncadd [#allocation3], %s23
      %s25 = sshll.u32 [#allocation2], 4
      %s26 = int_to_ptr.vmem [resolvable:$true] %s25
      %31 = dma.hbm_to_vmem [thread:$0]  %s2, 512, %s26, [#allocation3], 128, 128, 8
    $region13: #{tpu_custom_call.1} parent=1 // pred_fallthru
      _
    // Predicated region
    $region14: #{tpu_custom_call.1} parent=1 // pred_check
      _
    $region15: #{tpu_custom_call.1} parent=1 // pred_check_branch
      %33 = sbr.rel (0) target = $region17
    $region16: #{tpu_custom_call.1} parent=1 // pred_region
      _
    $region17: #{tpu_custom_call.1} parent=1 // pred_fallthru
      _
    // Predicated region
    $region18: #{tpu_custom_call.1} parent=1 // pred_check
      _
    $region19: #{tpu_custom_call.1} parent=1 // pred_check_branch
      %35 = sbr.rel (0) target = $region21
    $region20: #{tpu_custom_call.1} parent=1 // pred_region
      %s37 = ssub.s32 1024, 1024
      %38 = vsyncadd [#allocation6], %s37
      %s39 = sshll.u32 [#allocation5], 4
      %s40 = int_to_ptr.vmem [resolvable:$true] %s39
      %45 = dma.hbm_to_vmem [thread:$0]  %s4, 1024, %s40, [#allocation6], 128, 128, 8
    $region21: #{tpu_custom_call.1} parent=1 // pred_fallthru
      _
    // Predicated region
    $region22: #{tpu_custom_call.1} parent=1 // pred_check
      _
    $region23: #{tpu_custom_call.1} parent=1 // pred_check_branch
      %47 = sbr.rel (0) target = $region25
    $region24: #{tpu_custom_call.1} parent=1 // pred_region
      _
    $region25: #{tpu_custom_call.1} parent=1 // pred_fallthru
      _
    // Predicated region
    $region26: #{tpu_custom_call.1} parent=1 // pred_check
      _
    $region27: #{tpu_custom_call.1} parent=1 // pred_check_branch
      %49 = sbr.rel (0) target = $region29
    $region28: #{tpu_custom_call.1} parent=1 // pred_region
      %s51 = ssub.s32 1024, 1024
      %52 = vsyncadd [#allocation6], %s51
      %s53 = sshll.u32 [#allocation7], 4
      %s54 = int_to_ptr.vmem [resolvable:$true] %s53
      %59 = dma.hbm_to_vmem [thread:$0]  %s6, 1024, %s54, [#allocation6], 128, 128, 8
    $region29: #{tpu_custom_call.1} parent=1 // pred_fallthru
      _
    // Predicated region
    $region30: #{tpu_custom_call.1} parent=1 // pred_check
      _
    $region31: #{tpu_custom_call.1} parent=1 // pred_check_branch
      %61 = sbr.rel (0) target = $region33
    $region32: #{tpu_custom_call.1} parent=1 // pred_region
      _
    $region33: #{tpu_custom_call.1} parent=1 // pred_fallthru
      _
    // Predicated region
    $region34: #{tpu_custom_call.1} parent=1 // pred_check
      _
    $region35: #{tpu_custom_call.1} parent=1 // pred_check_branch
      %63 = sbr.rel (0) target = $region37
    $region36: #{tpu_custom_call.1} parent=1 // pred_region
      %64 = dma.done [#allocation3], 512
    $region37: #{tpu_custom_call.1} parent=1 // pred_fallthru
      _
    // Predicated region
    $region38: #{tpu_custom_call.1} parent=1 // pred_check
      _
    $region39: #{tpu_custom_call.1} parent=1 // pred_check_branch
      %66 = sbr.rel (0) target = $region41
    $region40: #{tpu_custom_call.1} parent=1 // pred_region
      %67 = dma.done [#allocation6], 1024
    $region41: #{tpu_custom_call.1} parent=1 // pred_fallthru
      _
    // Predicated region
    $region42: #{tpu_custom_call.1} parent=1 // pred_check
      _
    $region43: #{tpu_custom_call.1} parent=1 // pred_check_branch
      %69 = sbr.rel (0) target = $region45
    $region44: #{tpu_custom_call.1} parent=1 // pred_region
      %70 = dma.done [#allocation6], 1024
    $region45: #{tpu_custom_call.1} parent=1 // pred_fallthru
      _
    %v71 = vld [vmem:[%s0] sm:$0xff]
    %v72 = vld [vmem:[%s0 + $0x8] sm:$0xff]
    %v73 = vlaneseq
    %v74 = vand.u32 %v73, 127
    %75 = vset.pattern.permute.xlu0 0
    %76 = vperm.xlu0 %75, %v71
    %v77 = vpop.permute.xlu0 %76
    %78 = vset.pattern.permute.xlu0 0
    %79 = vperm.xlu0 %78, %v72
    %v80 = vpop.permute.xlu0 %79
    %vm81 = vcmp.eq.s32.totalorder %v77, %v74
    %vm82 = vcmp.eq.s32.totalorder %v80, %v74
    %v83 = vsel %vm81, 1, 0
    %v84 = vsel %vm82, 1, 0
    %v85 = vcvt.s32.f32 %v83
    %v86 = vcvt.s32.f32 %v84
    %v87 = vld [vmem:[%s1] sm:$0xff]
    %v88 = vld [vmem:[%s1 + $0x8] sm:$0xff]
    %vm89 = vcmask 130048
    %v91 = vsel %vm89, %v85, 0
    %v94 = vsel %vm89, %v86, 0
    %96 = vmatprep.subr.mxu0 0.0
    %97 = vmatpush1.msra.mxu0 %v87
    %98 = vmatprep.subr.mxu0 0.0
    %99 = vmatpush1.msra.mxu0 %v88
    %100 = vmatprep.subr.mxu0 0.0
    %101 = vmatpush1.msra.mxu0 0.0
    %102 = vmatprep.subr.mxu0 0.0
    %103 = vmatpush1.msra.mxu0 0.0
    %104 = vmatprep.subr.mxu0 0.0
    %105 = vmatpush1.msra.mxu0 0.0
    %106 = vmatprep.subr.mxu0 0.0
    %107 = vmatpush1.msra.mxu0 0.0
    %108 = vmatprep.subr.mxu0 0.0
    %109 = vmatpush1.msra.mxu0 0.0
    %110 = vmatprep.subr.mxu0 0.0
    %111 = vmatpush1.msra.mxu0 0.0
    %112 = vmatprep.subr.mxu0 0.0
    %113 = vmatpush1.msra.mxu0 0.0
    %114 = vmatprep.subr.mxu0 0.0
    %115 = vmatpush1.msra.mxu0 0.0
    %116 = vmatprep.subr.mxu0 0.0
    %117 = vmatpush1.msra.mxu0 0.0
    %118 = vmatprep.subr.mxu0 0.0
    %119 = vmatpush1.msra.mxu0 0.0
    %120 = vmatprep.subr.mxu0 0.0
    %121 = vmatpush1.msra.mxu0 0.0
    %122 = vmatprep.subr.mxu0 0.0
    %123 = vmatpush1.msra.mxu0 0.0
    %124 = vmatprep.subr.mxu0 0.0
    %125 = vmatpush1.msra.mxu0 0.0
    %126 = vmatprep.subr.mxu0 0.0
    %127 = vmatpush1.msra.mxu0 0.0
    %128 = vmatprep.subr.mxu0 0.0
    %129 = vmatpush1.msra.mxu0 0.0
    %130 = vmatprep.subr.mxu0 0.0
    %131 = vmatpush1.msra.mxu0 0.0
    %132 = vmatprep.subr.mxu0 0.0
    %133 = vmatpush1.msra.mxu0 0.0
    %134 = vmatprep.subr.mxu0 0.0
    %135 = vmatpush1.msra.mxu0 0.0
    %136 = vmatprep.subr.mxu0 0.0
    %137 = vmatpush1.msra.mxu0 0.0
    %138 = vmatprep.subr.mxu0 0.0
    %139 = vmatpush1.msra.mxu0 0.0
    %140 = vmatprep.subr.mxu0 0.0
    %141 = vmatpush1.msra.mxu0 0.0
    %142 = vmatprep.subr.mxu0 0.0
    %143 = vmatpush1.msra.mxu0 0.0
    %144 = vmatprep.subr.mxu0 0.0
    %145 = vmatpush1.msra.mxu0 0.0
    %146 = vmatprep.subr.mxu0 0.0
    %147 = vmatpush1.msra.mxu0 0.0
    %148 = vmatprep.subr.mxu0 0.0
    %149 = vmatpush1.msra.mxu0 0.0
    %150 = vmatprep.subr.mxu0 0.0
    %151 = vmatpush1.msra.mxu0 0.0
    %152 = vmatprep.subr.mxu0 0.0
    %153 = vmatpush1.msra.mxu0 0.0
    %154 = vmatprep.subr.mxu0 0.0
    %155 = vmatpush1.msra.mxu0 0.0
    %156 = vmatprep.subr.mxu0 0.0
    %157 = vmatpush1.msra.mxu0 0.0
    %158 = vmatprep.subr.mxu0 0.0
    %159 = vmatpush1.msra.mxu0 0.0
    %160 = vmatprep.mubr.f32.mxu0 0.0
    %161 = vmatmul.mubr.f32.gmra.mrb[0].mxu0 %v91
    %v162 = vpop.f32.mrb[0].mxu0
    %v163 = vadd.f32 0.0, %v162
    %v164 = vpop.f32.mrb[0].mxu0
    %165 = vmatprep.mubr.f32.mxu0 0.0
    %166 = vmatmul.mubr.f32.gmra.mrb[0].mxu0 %v94
    %v167 = vpop.f32.mrb[0].mxu0
    %v168 = vadd.f32 0.0, %v167
    %v169 = vpop.f32.mrb[0].mxu0
    %170 = vdwg.mxu0
    %v171 = vld [vmem:[#allocation2] sm:$0xff]
    %v172 = vld [vmem:[#allocation2 + $0x8] sm:$0xff]
    %v173 = vld [vmem:[#allocation2 + $0x10] sm:$0xff]
    %v174 = vld [vmem:[#allocation2 + $0x18] sm:$0xff]
    %v175 = vld [vmem:[%s3] sm:$0x1]
    %v177 = vlaneseq
    %v178 = vshrl.u32 %v177, 7
    %v179 = vsub.s32 0, %v178
    %v180 = vrot.slane %v175, %v179
    %vm182 = vcmask 261120
    %v184 = vsel %vm182, %v163, 0
    %v187 = vsel %vm182, %v168, 0
    %189 = vmatprep.subr.mxu0 0.0
    %190 = vmatpush1.msra.mxu0 %v171
    %191 = vmatprep.subr.mxu0 0.0
    %192 = vmatpush1.msra.mxu0 %v172
    %193 = vmatprep.subr.mxu0 0.0
    %194 = vmatpush1.msra.mxu0 %v173
    %195 = vmatprep.subr.mxu0 0.0
    %196 = vmatpush1.msra.mxu0 %v174
    %197 = vmatprep.subr.mxu0 0.0
    %198 = vmatpush1.msra.mxu0 0.0
    %199 = vmatprep.subr.mxu0 0.0
    %200 = vmatpush1.msra.mxu0 0.0
    %201 = vmatprep.subr.mxu0 0.0
    %202 = vmatpush1.msra.mxu0 0.0
    %203 = vmatprep.subr.mxu0 0.0
    %204 = vmatpush1.msra.mxu0 0.0
    %205 = vmatprep.subr.mxu0 0.0
    %206 = vmatpush1.msra.mxu0 0.0
    %207 = vmatprep.subr.mxu0 0.0
    %208 = vmatpush1.msra.mxu0 0.0
    %209 = vmatprep.subr.mxu0 0.0
    %210 = vmatpush1.msra.mxu0 0.0
    %211 = vmatprep.subr.mxu0 0.0
    %212 = vmatpush1.msra.mxu0 0.0
    %213 = vmatprep.subr.mxu0 0.0
    %214 = vmatpush1.msra.mxu0 0.0
    %215 = vmatprep.subr.mxu0 0.0
    %216 = vmatpush1.msra.mxu0 0.0
    %217 = vmatprep.subr.mxu0 0.0
    %218 = vmatpush1.msra.mxu0 0.0
    %219 = vmatprep.subr.mxu0 0.0
    %220 = vmatpush1.msra.mxu0 0.0
    %221 = vmatprep.subr.mxu0 0.0
    %222 = vmatpush1.msra.mxu0 0.0
    %223 = vmatprep.subr.mxu0 0.0
    %224 = vmatpush1.msra.mxu0 0.0
    %225 = vmatprep.subr.mxu0 0.0
    %226 = vmatpush1.msra.mxu0 0.0
    %227 = vmatprep.subr.mxu0 0.0
    %228 = vmatpush1.msra.mxu0 0.0
    %229 = vmatprep.subr.mxu0 0.0
    %230 = vmatpush1.msra.mxu0 0.0
    %231 = vmatprep.subr.mxu0 0.0
    %232 = vmatpush1.msra.mxu0 0.0
    %233 = vmatprep.subr.mxu0 0.0
    %234 = vmatpush1.msra.mxu0 0.0
    %235 = vmatprep.subr.mxu0 0.0
    %236 = vmatpush1.msra.mxu0 0.0
    %237 = vmatprep.subr.mxu0 0.0
    %238 = vmatpush1.msra.mxu0 0.0
    %239 = vmatprep.subr.mxu0 0.0
    %240 = vmatpush1.msra.mxu0 0.0
    %241 = vmatprep.subr.mxu0 0.0
    %242 = vmatpush1.msra.mxu0 0.0
    %243 = vmatprep.subr.mxu0 0.0
    %244 = vmatpush1.msra.mxu0 0.0
    %245 = vmatprep.subr.mxu0 0.0
    %246 = vmatpush1.msra.mxu0 0.0
    %247 = vmatprep.subr.mxu0 0.0
    %248 = vmatpush1.msra.mxu0 0.0
    %249 = vmatprep.subr.mxu0 0.0
    %250 = vmatpush1.msra.mxu0 0.0
    %251 = vmatprep.subr.mxu0 0.0
    %252 = vmatpush1.msra.mxu0 0.0
    %253 = vmatprep.mubr.f32.mxu0 0.0
    %254 = vmatmul.mubr.f32.gmra.mrb[0].mxu0 %v184
    %v255 = vpop.f32.mrb[0].mxu0
    %v256 = vadd.f32 %v180, %v255
    %v257 = vpop.f32.mrb[0].mxu0
    %258 = vmatprep.mubr.f32.mxu0 0.0
    %259 = vmatmul.mubr.f32.gmra.mrb[0].mxu0 %v187
    %v260 = vpop.f32.mrb[0].mxu0
    %v261 = vadd.f32 %v180, %v260
    %v262 = vpop.f32.mrb[0].mxu0
    %263 = vdwg.mxu0
    %v264 = vmax.f32 %v256, 0.0
    %v265 = vmax.f32 %v261, 0.0
    %v266 = vld [vmem:[#allocation5] sm:$0xff]
    %v267 = vld [vmem:[#allocation5 + $0x8] sm:$0xff]
    %v268 = vld [vmem:[#allocation5 + $0x10] sm:$0xff]
    %v269 = vld [vmem:[#allocation5 + $0x18] sm:$0xff]
    %v270 = vld [vmem:[#allocation5 + $0x20] sm:$0xff]
    %v271 = vld [vmem:[#allocation5 + $0x28] sm:$0xff]
    %v272 = vld [vmem:[#allocation5 + $0x30] sm:$0xff]
    %v273 = vld [vmem:[#allocation5 + $0x38] sm:$0xff]
    %v274 = vld [vmem:[%s5] sm:$0x1]
    %v276 = vlaneseq
    %v277 = vshrl.u32 %v276, 7
    %v278 = vsub.s32 0, %v277
    %v279 = vrot.slane %v274, %v278
    %vm281 = vcmask 523264
    %v283 = vsel %vm281, %v264, 0
    %v286 = vsel %vm281, %v265, 0
    %288 = vmatprep.subr.mxu0 0.0
    %289 = vmatpush1.msra.mxu0 %v266
    %290 = vmatprep.subr.mxu0 0.0
    %291 = vmatpush1.msra.mxu0 %v267
    %292 = vmatprep.subr.mxu0 0.0
    %293 = vmatpush1.msra.mxu0 %v268
    %294 = vmatprep.subr.mxu0 0.0
    %295 = vmatpush1.msra.mxu0 %v269
    %296 = vmatprep.subr.mxu0 0.0
    %297 = vmatpush1.msra.mxu0 %v270
    %298 = vmatprep.subr.mxu0 0.0
    %299 = vmatpush1.msra.mxu0 %v271
    %300 = vmatprep.subr.mxu0 0.0
    %301 = vmatpush1.msra.mxu0 %v272
    %302 = vmatprep.subr.mxu0 0.0
    %303 = vmatpush1.msra.mxu0 %v273
    %304 = vmatprep.subr.mxu0 0.0
    %305 = vmatpush1.msra.mxu0 0.0
    %306 = vmatprep.subr.mxu0 0.0
    %307 = vmatpush1.msra.mxu0 0.0
    %308 = vmatprep.subr.mxu0 0.0
    %309 = vmatpush1.msra.mxu0 0.0
    %310 = vmatprep.subr.mxu0 0.0
    %311 = vmatpush1.msra.mxu0 0.0
    %312 = vmatprep.subr.mxu0 0.0
    %313 = vmatpush1.msra.mxu0 0.0
    %314 = vmatprep.subr.mxu0 0.0
    %315 = vmatpush1.msra.mxu0 0.0
    %316 = vmatprep.subr.mxu0 0.0
    %317 = vmatpush1.msra.mxu0 0.0
    %318 = vmatprep.subr.mxu0 0.0
    %319 = vmatpush1.msra.mxu0 0.0
    %320 = vmatprep.subr.mxu0 0.0
    %321 = vmatpush1.msra.mxu0 0.0
    %322 = vmatprep.subr.mxu0 0.0
    %323 = vmatpush1.msra.mxu0 0.0
    %324 = vmatprep.subr.mxu0 0.0
    %325 = vmatpush1.msra.mxu0 0.0
    %326 = vmatprep.subr.mxu0 0.0
    %327 = vmatpush1.msra.mxu0 0.0
    %328 = vmatprep.subr.mxu0 0.0
    %329 = vmatpush1.msra.mxu0 0.0
    %330 = vmatprep.subr.mxu0 0.0
    %331 = vmatpush1.msra.mxu0 0.0
    %332 = vmatprep.subr.mxu0 0.0
    %333 = vmatpush1.msra.mxu0 0.0
    %334 = vmatprep.subr.mxu0 0.0
    %335 = vmatpush1.msra.mxu0 0.0
    %336 = vmatprep.subr.mxu0 0.0
    %337 = vmatpush1.msra.mxu0 0.0
    %338 = vmatprep.subr.mxu0 0.0
    %339 = vmatpush1.msra.mxu0 0.0
    %340 = vmatprep.subr.mxu0 0.0
    %341 = vmatpush1.msra.mxu0 0.0
    %342 = vmatprep.subr.mxu0 0.0
    %343 = vmatpush1.msra.mxu0 0.0
    %344 = vmatprep.subr.mxu0 0.0
    %345 = vmatpush1.msra.mxu0 0.0
    %346 = vmatprep.subr.mxu0 0.0
    %347 = vmatpush1.msra.mxu0 0.0
    %348 = vmatprep.subr.mxu0 0.0
    %349 = vmatpush1.msra.mxu0 0.0
    %350 = vmatprep.subr.mxu0 0.0
    %351 = vmatpush1.msra.mxu0 0.0
    %352 = vmatprep.mubr.f32.mxu0 0.0
    %353 = vmatmul.mubr.f32.gmra.mrb[0].mxu0 %v283
    %v354 = vpop.f32.mrb[0].mxu0
    %v355 = vadd.f32 %v279, %v354
    %v356 = vpop.f32.mrb[0].mxu0
    %357 = vmatprep.mubr.f32.mxu0 0.0
    %358 = vmatmul.mubr.f32.gmra.mrb[0].mxu0 %v286
    %v359 = vpop.f32.mrb[0].mxu0
    %v360 = vadd.f32 %v279, %v359
    %v361 = vpop.f32.mrb[0].mxu0
    %362 = vdwg.mxu0
    %v363 = vmax.f32 %v355, 0.0
    %v364 = vmax.f32 %v360, 0.0
    %v365 = vld [vmem:[#allocation7] sm:$0xff]
    %v366 = vld [vmem:[#allocation7 + $0x8] sm:$0xff]
    %v367 = vld [vmem:[#allocation7 + $0x10] sm:$0xff]
    %v368 = vld [vmem:[#allocation7 + $0x18] sm:$0xff]
    %v369 = vld [vmem:[#allocation7 + $0x20] sm:$0xff]
    %v370 = vld [vmem:[#allocation7 + $0x28] sm:$0xff]
    %v371 = vld [vmem:[#allocation7 + $0x30] sm:$0xff]
    %v372 = vld [vmem:[#allocation7 + $0x38] sm:$0xff]
    %v373 = vld [vmem:[%s7] sm:$0x1]
    %v375 = vlaneseq
    %v376 = vshrl.u32 %v375, 7
    %v377 = vsub.s32 0, %v376
    %v378 = vrot.slane %v373, %v377
    %v381 = vsel %vm281, %v363, 0
    %v384 = vsel %vm281, %v364, 0
    %386 = vmatprep.subr.mxu0 0.0
    %387 = vmatpush1.msra.mxu0 %v365
    %388 = vmatprep.subr.mxu0 0.0
    %389 = vmatpush1.msra.mxu0 %v366
    %390 = vmatprep.subr.mxu0 0.0
    %391 = vmatpush1.msra.mxu0 %v367
    %392 = vmatprep.subr.mxu0 0.0
    %393 = vmatpush1.msra.mxu0 %v368
    %394 = vmatprep.subr.mxu0 0.0
    %395 = vmatpush1.msra.mxu0 %v369
    %396 = vmatprep.subr.mxu0 0.0
    %397 = vmatpush1.msra.mxu0 %v370
    %398 = vmatprep.subr.mxu0 0.0
    %399 = vmatpush1.msra.mxu0 %v371
    %400 = vmatprep.subr.mxu0 0.0
    %401 = vmatpush1.msra.mxu0 %v372
    %402 = vmatprep.subr.mxu0 0.0
    %403 = vmatpush1.msra.mxu0 0.0
    %404 = vmatprep.subr.mxu0 0.0
    %405 = vmatpush1.msra.mxu0 0.0
    %406 = vmatprep.subr.mxu0 0.0
    %407 = vmatpush1.msra.mxu0 0.0
    %408 = vmatprep.subr.mxu0 0.0
    %409 = vmatpush1.msra.mxu0 0.0
    %410 = vmatprep.subr.mxu0 0.0
    %411 = vmatpush1.msra.mxu0 0.0
    %412 = vmatprep.subr.mxu0 0.0
    %413 = vmatpush1.msra.mxu0 0.0
    %414 = vmatprep.subr.mxu0 0.0
    %415 = vmatpush1.msra.mxu0 0.0
    %416 = vmatprep.subr.mxu0 0.0
    %417 = vmatpush1.msra.mxu0 0.0
    %418 = vmatprep.subr.mxu0 0.0
    %419 = vmatpush1.msra.mxu0 0.0
    %420 = vmatprep.subr.mxu0 0.0
    %421 = vmatpush1.msra.mxu0 0.0
    %422 = vmatprep.subr.mxu0 0.0
    %423 = vmatpush1.msra.mxu0 0.0
    %424 = vmatprep.subr.mxu0 0.0
    %425 = vmatpush1.msra.mxu0 0.0
    %426 = vmatprep.subr.mxu0 0.0
    %427 = vmatpush1.msra.mxu0 0.0
    %428 = vmatprep.subr.mxu0 0.0
    %429 = vmatpush1.msra.mxu0 0.0
    %430 = vmatprep.subr.mxu0 0.0
    %431 = vmatpush1.msra.mxu0 0.0
    %432 = vmatprep.subr.mxu0 0.0
    %433 = vmatpush1.msra.mxu0 0.0
    %434 = vmatprep.subr.mxu0 0.0
    %435 = vmatpush1.msra.mxu0 0.0
    %436 = vmatprep.subr.mxu0 0.0
    %437 = vmatpush1.msra.mxu0 0.0
    %438 = vmatprep.subr.mxu0 0.0
    %439 = vmatpush1.msra.mxu0 0.0
    %440 = vmatprep.subr.mxu0 0.0
    %441 = vmatpush1.msra.mxu0 0.0
    %442 = vmatprep.subr.mxu0 0.0
    %443 = vmatpush1.msra.mxu0 0.0
    %444 = vmatprep.subr.mxu0 0.0
    %445 = vmatpush1.msra.mxu0 0.0
    %446 = vmatprep.subr.mxu0 0.0
    %447 = vmatpush1.msra.mxu0 0.0
    %448 = vmatprep.subr.mxu0 0.0
    %449 = vmatpush1.msra.mxu0 0.0
    %450 = vmatprep.mubr.f32.mxu0 0.0
    %451 = vmatmul.mubr.f32.gmra.mrb[0].mxu0 %v381
    %v452 = vpop.f32.mrb[0].mxu0
    %v453 = vadd.f32 %v378, %v452
    %v454 = vpop.f32.mrb[0].mxu0
    %455 = vmatprep.mubr.f32.mxu0 0.0
    %456 = vmatmul.mubr.f32.gmra.mrb[0].mxu0 %v384
    %v457 = vpop.f32.mrb[0].mxu0
    %v458 = vadd.f32 %v378, %v457
    %v459 = vpop.f32.mrb[0].mxu0
    %460 = vdwg.mxu0
    %461 = vst [vmem:[#allocation8] sm:$0xff] %v453
    %462 = vst [vmem:[#allocation8 + $0x8] sm:$0xff] %v458
    // Predicated region
    $region46: #{tpu_custom_call.1} parent=1 // pred_check
      _
    $region47: #{tpu_custom_call.1} parent=1 // pred_check_branch
      %464 = sbr.rel (0) target = $region49
    $region48: #{tpu_custom_call.1} parent=1 // pred_region
      %s466 = ssub.s32 256, 256
      %467 = vsyncadd [#allocation4], %s466
      %s468 = sshll.u32 [#allocation8], 4
      %s469 = int_to_ptr.vmem [resolvable:$true] %s468
      %474 = dma.vmem_to_hbm [thread:$0]  %s469, 256, %s8, [#allocation4], 128, 128, 8
    $region49: #{tpu_custom_call.1} parent=1 // pred_fallthru
      _
    // Predicated region
    $region50: #{tpu_custom_call.1} parent=1 // pred_check
      _
    $region51: #{tpu_custom_call.1} parent=1 // pred_check_branch
      %476 = sbr.rel (0) target = $region53
    $region52: #{tpu_custom_call.1} parent=1 // pred_region
      %477 = dma.done [#allocation4], 256
    $region53: #{tpu_custom_call.1} parent=1 // pred_fallthru
      _
    %478 = vsyncpa [#allocation3], 1
    %479 = vsyncpa [#allocation6], 1
    %480 = vsyncpa [#allocation4], 1

</llo_original>
